<compile_context>
chip_gen: v7x
topology: tpu7x:2x2x1
jax: 0.10.0
libtpu: 0.0.40
codegen_flags: <defaults>
</compile_context>

<pallas_src>
import functools

import jax
import jax.numpy as jnp
from jax.experimental import pallas as pl
from jax.experimental.pallas import tpu as pltpu

STATE_DIM = 6        # TwoVehiclesEnv.observation_space.shape[0]
ACTION_DIM = 2       # TwoVehiclesEnv.action_space.shape[0]
HIDDEN = 32
MAX_ACTION = 0.78    # float(env.action_space.high[0])

LANE = 128           # TPU lane width
DEFAULT_MAX_TB = 16384   # cap on batch-lane tile (multiple of 128); VMEM-safe on v7x
MIN_GRID_STEPS = 2       # keep >=2 grid steps when possible (v7x has 2 TensorCores)


def actor_kernel(x_ref, w1_ref, b1_ref, w2_ref, b2_ref, w3_ref, b3_ref, o_ref,
                 *, bf16_epilogue):
    # x_ref : [STATE_DIM, TB]   f32/bf16  (batch on lanes; cast to bf16 here)
    # wN_ref: [out, in]         bf16      (pre-transposed in prepare_params)
    # bN_ref: [out, 1]          f32
    # o_ref : [ACTION_DIM, TB]  f32 or bf16
    ep = jnp.bfloat16 if bf16_epilogue else jnp.float32
    x = x_ref[...].astype(jnp.bfloat16)

    h1 = jnp.dot(w1_ref[...], x, preferred_element_type=jnp.float32).astype(ep)
    h1 = jnp.maximum(h1 + b1_ref[...].astype(ep), 0)

    h2 = jnp.dot(w2_ref[...], h1.astype(jnp.bfloat16),
                 preferred_element_type=jnp.float32).astype(ep)
    h2 = jnp.maximum(h2 + b2_ref[...].astype(ep), 0)

    a = jnp.dot(w3_ref[...], h2.astype(jnp.bfloat16),
                preferred_element_type=jnp.float32).astype(ep)
    a = a + b3_ref[...].astype(ep)
    o_ref[...] = (MAX_ACTION * jnp.tanh(a)).astype(o_ref.dtype)


def _default_bf16_epilogue():
    """bf16 bias/ReLU/tanh only where the VPU/EUP support bf16 (v6e / v7x)."""
    try:
        kind = jax.devices()[0].device_kind.lower()
        return ("v6" in kind) or ("v7" in kind)
    except Exception:
        return False


def _choose_tiling(batch, max_tb):
    """Pick (b_pad, tile, n_tiles): tile multiple of 128, adapted to the batch,
    capped at max_tb, and with >=2 grid steps when the batch allows (v7x)."""
    lanes = max(1, pl.cdiv(batch, LANE))          # number of 128-lane blocks
    n_tiles = pl.cdiv(lanes * LANE, max_tb)       # enough steps so tile <= max_tb
    if lanes >= MIN_GRID_STEPS:
        n_tiles = max(n_tiles, MIN_GRID_STEPS)
    n_tiles = min(n_tiles, lanes)
    tb = pl.cdiv(lanes, n_tiles) * LANE
    n_tiles = pl.cdiv(lanes * LANE, tb)
    return n_tiles * tb, tb, n_tiles


def prepare_params(params):
    """One-time relayout of the Linear weights for the kernel (amortized across
    all forward calls): weights transposed to [out, in] in bf16, biases [out,1] f32."""
    return {
        "w1t": params["w1"].T.astype(jnp.bfloat16),   # [HIDDEN, STATE_DIM]
        "w2t": params["w2"].T.astype(jnp.bfloat16),   # [HIDDEN, HIDDEN]
        "w3t": params["w3"].T.astype(jnp.bfloat16),   # [ACTION_DIM, HIDDEN]
        "b1t": params["b1"].T.astype(jnp.float32),    # [HIDDEN, 1]
        "b2t": params["b2"].T.astype(jnp.float32),    # [HIDDEN, 1]
        "b3t": params["b3"].T.astype(jnp.float32),    # [ACTION_DIM, 1]
    }


def actor_forward_t(state_t, prep, *, max_tb=DEFAULT_MAX_TB, bf16_epilogue=None,
                    out_dtype=jnp.float32):
    """Native (transposed-layout) entry point.

    state_t: [STATE_DIM, B]  (f32)  -- keep this layout in the DDPG pipeline to
                                       avoid relayout passes around the kernel.
    returns: [ACTION_DIM, B] in out_dtype.
    """
    s_dim, B = state_t.shape
    assert s_dim == STATE_DIM
    if bf16_epilogue is None:
        bf16_epilogue = _default_bf16_epilogue()

    b_pad, tb, n_tiles = _choose_tiling(B, max_tb)
    x = state_t if b_pad == B else jnp.pad(state_t, ((0, 0), (0, b_pad - B)))

    resident = lambda a: pl.BlockSpec(a.shape, lambda i: (0, 0))

    out_t = pl.pallas_call(
        functools.partial(actor_kernel, bf16_epilogue=bf16_epilogue),
        out_shape=jax.ShapeDtypeStruct((ACTION_DIM, b_pad), out_dtype),
        grid=(n_tiles,),
        in_specs=[
            pl.BlockSpec((STATE_DIM, tb), lambda i: (0, i)),   # state tile
            resident(prep["w1t"]), resident(prep["b1t"]),
            resident(prep["w2t"]), resident(prep["b2t"]),
            resident(prep["w3t"]), resident(prep["b3t"]),
        ],
        out_specs=pl.BlockSpec((ACTION_DIM, tb), lambda i: (0, i)),
        compiler_params=pltpu.CompilerParams(
            dimension_semantics=("parallel",),
        ),
    )(x, prep["w1t"], prep["b1t"], prep["w2t"], prep["b2t"],
      prep["w3t"], prep["b3t"])

    return out_t if b_pad == B else out_t[:, :B]


def actor_forward(state, prep, **kwargs):
    """Compatibility wrapper matching Actor.forward: state [B, STATE_DIM] ->
    [B, ACTION_DIM].  Costs two small relayout ops; prefer actor_forward_t."""
    return actor_forward_t(state.T, prep, **kwargs).T


def init_params(key):
    """Deterministic init mimicking torch.nn.Linear default U(-1/sqrt(fan_in), +)."""
    ks = jax.random.split(key, 6)

    def linear(kw, kb, fan_in, fan_out):
        bound = 1.0 / jnp.sqrt(fan_in)
        w = jax.random.uniform(kw, (fan_in, fan_out), jnp.float32, -bound, bound)
        b = jax.random.uniform(kb, (1, fan_out), jnp.float32, -bound, bound)
        return w, b

    w1, b1 = linear(ks[0], ks[1], STATE_DIM, HIDDEN)
    w2, b2 = linear(ks[2], ks[3], HIDDEN, HIDDEN)
    w3, b3 = linear(ks[4], ks[5], HIDDEN, ACTION_DIM)
    return {"w1": w1, "b1": b1, "w2": w2, "b2": b2, "w3": w3, "b3": b3}


def actor_reference_bf16(state, params):
    """Pure-JAX reference mirroring the kernel's bf16-matmul / f32 epilogue math."""
    xb = state.astype(jnp.bfloat16)
    h1 = jnp.maximum(
        jnp.dot(xb, params["w1"].astype(jnp.bfloat16),
                preferred_element_type=jnp.float32) + params["b1"], 0.0)
    h2 = jnp.maximum(
        jnp.dot(h1.astype(jnp.bfloat16), params["w2"].astype(jnp.bfloat16),
                preferred_element_type=jnp.float32) + params["b2"], 0.0)
    a = jnp.dot(h2.astype(jnp.bfloat16), params["w3"].astype(jnp.bfloat16),
                preferred_element_type=jnp.float32) + params["b3"]
    return MAX_ACTION * jnp.tanh(a)


def actor_reference_f32(state, params):
    """Full-precision reference (the PyTorch module's math)."""
    h1 = jax.nn.relu(state @ params["w1"] + params["b1"])
    h2 = jax.nn.relu(h1 @ params["w2"] + params["b2"])
    return MAX_ACTION * jnp.tanh(h2 @ params["w3"] + params["b3"])


if __name__ == "__main__":
    key = jax.random.PRNGKey(0)
    k_param, k_state = jax.random.split(key)

    params = init_params(k_param)
    prep = prepare_params(params)

    # Small batch of states sampled within the observation-space bounds.
    B = 8
    low = jnp.array([0.5, 0.5, 0.0, 0.5, 0.5, 0.0], jnp.float32)
    high = jnp.array([1.0, 1.0, 2.0 * jnp.pi, 1.0, 1.0, 2.0 * jnp.pi], jnp.float32)
    u = jax.random.uniform(k_state, (B, STATE_DIM), jnp.float32)
    state = low + u * (high - low)
    state_t = state.T                       # pipeline-native [features, batch]

    ref_bf16 = actor_reference_bf16(state, params)
    ref_f32 = actor_reference_f32(state, params)

    # 1) f32-epilogue path (v5e-safe), checked tight against the bf16-matched ref.
    out_t = actor_forward_t(state_t, prep, bf16_epilogue=False)
    out = jax.block_until_ready(out_t).T
    assert out.shape == (B, ACTION_DIM)
    assert jnp.allclose(out, ref_bf16, atol=2e-3, rtol=2e-3), \
        "mismatch vs bf16-matched JAX reference"
    assert jnp.allclose(out, ref_f32, atol=3e-2), \
        "mismatch vs full-precision JAX reference"

    # 2) auto mode (bf16 epilogue on v6e/v7x), looser check vs f32 reference.
    out_auto = jax.block_until_ready(actor_forward_t(state_t, prep)).T
    assert jnp.allclose(out_auto, ref_f32, atol=5e-2), \
        "auto-epilogue mismatch vs full-precision JAX reference"

    # 3) optional bf16 output (halves writeback if the consumer tolerates it).
    out_bf16 = jax.block_until_ready(
        actor_forward_t(state_t, prep, out_dtype=jnp.bfloat16)).astype(jnp.float32).T
    assert jnp.allclose(out_bf16, ref_f32, atol=5e-2), \
        "bf16-output mismatch vs full-precision JAX reference"

    # 4) [B, state_dim] compatibility wrapper matches the native path exactly.
    out_compat = jax.block_until_ready(actor_forward(state, prep, bf16_epilogue=False))
    assert jnp.allclose(out_compat, out, atol=1e-6)

    print("KERNEL_OK")
</pallas_src>

<mosaic_0001>
module attributes {stable_mosaic.version = 11 : i64} {
  func.func @actor_kernel(%arg0: i32, %arg1: memref<6x128xf32, #tpu.memory_space<vmem>>, %arg2: memref<32x6xbf16, #tpu.memory_space<vmem>>, %arg3: memref<32x1xf32, #tpu.memory_space<vmem>>, %arg4: memref<32x32xbf16, #tpu.memory_space<vmem>>, %arg5: memref<32x1xf32, #tpu.memory_space<vmem>>, %arg6: memref<2x32xbf16, #tpu.memory_space<vmem>>, %arg7: memref<2x1xf32, #tpu.memory_space<vmem>>, %arg8: memref<2x128xf32, #tpu.memory_space<vmem>>) attributes {dimension_semantics = [#tpu.dimension_semantics<parallel>], iteration_bounds = array<i64: 1>, scalar_prefetch = 0 : i64, scratch_operands = 0 : i64, tpu.core_type = #tpu.core_type<tc>, window_params = [{transform_indices = @transform_0, window_bounds = array<i64: 6, 128>}, {pipeline_mode = #tpu.pipeline_mode<synchronous>, transform_indices = @transform_1, window_bounds = array<i64: 32, 6>}, {pipeline_mode = #tpu.pipeline_mode<synchronous>, transform_indices = @transform_2, window_bounds = array<i64: 32, 1>}, {pipeline_mode = #tpu.pipeline_mode<synchronous>, transform_indices = @transform_3, window_bounds = array<i64: 32, 32>}, {pipeline_mode = #tpu.pipeline_mode<synchronous>, transform_indices = @transform_4, window_bounds = array<i64: 32, 1>}, {pipeline_mode = #tpu.pipeline_mode<synchronous>, transform_indices = @transform_5, window_bounds = array<i64: 2, 32>}, {pipeline_mode = #tpu.pipeline_mode<synchronous>, transform_indices = @transform_6, window_bounds = array<i64: 2, 1>}, {transform_indices = @transform_7, window_bounds = array<i64: 2, 128>}]} {
    %c0 = arith.constant 0 : index
    %c0_0 = arith.constant 0 : index
    %0 = vector.load %arg1[%c0, %c0_0] : memref<6x128xf32, #tpu.memory_space<vmem>>, vector<6x128xf32>
    %1 = arith.truncf %0 : vector<6x128xf32> to vector<6x128xbf16>
    %c0_1 = arith.constant 0 : index
    %c0_2 = arith.constant 0 : index
    %2 = vector.load %arg2[%c0_1, %c0_2] : memref<32x6xbf16, #tpu.memory_space<vmem>>, vector<32x6xbf16>
    %cst = arith.constant dense<0.000000e+00> : vector<32x128xf32>
    %3 = tpu.matmul %2, %1, %cst {dimension_numbers = #tpu.dot_dimension_numbers<[1], [0], [0], [1], [0, 0, 1, 1], [], []>} : vector<32x6xbf16>, vector<6x128xbf16>, vector<32x128xf32> -> vector<32x128xf32>
    %c0_3 = arith.constant 0 : index
    %c0_4 = arith.constant 0 : index
    %4 = vector.load %arg3[%c0_3, %c0_4] : memref<32x1xf32, #tpu.memory_space<vmem>>, vector<32x1xf32>
    %5 = vector.broadcast %4 : vector<32x1xf32> to vector<32x128xf32>
    %6 = arith.addf %3, %5 : vector<32x128xf32>
    %cst_5 = arith.constant 0.000000e+00 : f32
    %7 = vector.broadcast %cst_5 : f32 to vector<32x128xf32>
    %8 = arith.maximumf %6, %7 : vector<32x128xf32>
    %c0_6 = arith.constant 0 : index
    %c0_7 = arith.constant 0 : index
    %9 = vector.load %arg4[%c0_6, %c0_7] : memref<32x32xbf16, #tpu.memory_space<vmem>>, vector<32x32xbf16>
    %10 = arith.truncf %8 : vector<32x128xf32> to vector<32x128xbf16>
    %cst_8 = arith.constant dense<0.000000e+00> : vector<32x128xf32>
    %11 = tpu.matmul %9, %10, %cst_8 {dimension_numbers = #tpu.dot_dimension_numbers<[1], [0], [0], [1], [0, 0, 1, 1], [], []>} : vector<32x32xbf16>, vector<32x128xbf16>, vector<32x128xf32> -> vector<32x128xf32>
    %c0_9 = arith.constant 0 : index
    %c0_10 = arith.constant 0 : index
    %12 = vector.load %arg5[%c0_9, %c0_10] : memref<32x1xf32, #tpu.memory_space<vmem>>, vector<32x1xf32>
    %13 = vector.broadcast %12 : vector<32x1xf32> to vector<32x128xf32>
    %14 = arith.addf %11, %13 : vector<32x128xf32>
    %cst_11 = arith.constant 0.000000e+00 : f32
    %15 = vector.broadcast %cst_11 : f32 to vector<32x128xf32>
    %16 = arith.maximumf %14, %15 : vector<32x128xf32>
    %c0_12 = arith.constant 0 : index
    %c0_13 = arith.constant 0 : index
    %17 = vector.load %arg6[%c0_12, %c0_13] : memref<2x32xbf16, #tpu.memory_space<vmem>>, vector<2x32xbf16>
    %18 = arith.truncf %16 : vector<32x128xf32> to vector<32x128xbf16>
    %cst_14 = arith.constant dense<0.000000e+00> : vector<2x128xf32>
    %19 = tpu.matmul %17, %18, %cst_14 {dimension_numbers = #tpu.dot_dimension_numbers<[1], [0], [0], [1], [0, 0, 1, 1], [], []>} : vector<2x32xbf16>, vector<32x128xbf16>, vector<2x128xf32> -> vector<2x128xf32>
    %c0_15 = arith.constant 0 : index
    %c0_16 = arith.constant 0 : index
    %20 = vector.load %arg7[%c0_15, %c0_16] : memref<2x1xf32, #tpu.memory_space<vmem>>, vector<2x1xf32>
    %21 = vector.broadcast %20 : vector<2x1xf32> to vector<2x128xf32>
    %22 = arith.addf %19, %21 : vector<2x128xf32>
    %23 = math.tanh %22 : vector<2x128xf32>
    %cst_17 = arith.constant 7.800000e-01 : f32
    %24 = vector.broadcast %cst_17 : f32 to vector<2x128xf32>
    %25 = arith.mulf %24, %23 : vector<2x128xf32>
    %c0_18 = arith.constant 0 : index
    %c0_19 = arith.constant 0 : index
    %26 = vector.load %arg8[%c0_18, %c0_19] : memref<2x128xf32, #tpu.memory_space<vmem>>, vector<2x128xf32>
    tpu.vector_store %arg8[%c0_18, %c0_19], %25 {strides = array<i32>} : memref<2x128xf32, #tpu.memory_space<vmem>>, vector<2x128xf32>,
    return
  }
  func.func @transform_0(%arg0: i32) -> (i32, i32) {
    %c0_i32 = arith.constant 0 : i32
    %c0_i32_0 = arith.constant 0 : i32
    return %c0_i32, %arg0 : i32, i32
  }
  func.func @transform_1(%arg0: i32) -> (i32, i32) {
    %c0_i32 = arith.constant 0 : i32
    %c0_i32_0 = arith.constant 0 : i32
    %c0_i32_1 = arith.constant 0 : i32
    return %c0_i32, %c0_i32_0 : i32, i32
  }
  func.func @transform_2(%arg0: i32) -> (i32, i32) {
    %c0_i32 = arith.constant 0 : i32
    %c0_i32_0 = arith.constant 0 : i32
    %c0_i32_1 = arith.constant 0 : i32
    return %c0_i32, %c0_i32_0 : i32, i32
  }
  func.func @transform_3(%arg0: i32) -> (i32, i32) {
    %c0_i32 = arith.constant 0 : i32
    %c0_i32_0 = arith.constant 0 : i32
    %c0_i32_1 = arith.constant 0 : i32
    return %c0_i32, %c0_i32_0 : i32, i32
  }
  func.func @transform_4(%arg0: i32) -> (i32, i32) {
    %c0_i32 = arith.constant 0 : i32
    %c0_i32_0 = arith.constant 0 : i32
    %c0_i32_1 = arith.constant 0 : i32
    return %c0_i32, %c0_i32_0 : i32, i32
  }
  func.func @transform_5(%arg0: i32) -> (i32, i32) {
    %c0_i32 = arith.constant 0 : i32
    %c0_i32_0 = arith.constant 0 : i32
    %c0_i32_1 = arith.constant 0 : i32
    return %c0_i32, %c0_i32_0 : i32, i32
  }
  func.func @transform_6(%arg0: i32) -> (i32, i32) {
    %c0_i32 = arith.constant 0 : i32
    %c0_i32_0 = arith.constant 0 : i32
    %c0_i32_1 = arith.constant 0 : i32
    return %c0_i32, %c0_i32_0 : i32, i32
  }
  func.func @transform_7(%arg0: i32) -> (i32, i32) {
    %c0_i32 = arith.constant 0 : i32
    %c0_i32_0 = arith.constant 0 : i32
    return %c0_i32, %arg0 : i32, i32
  }
}

</mosaic_0001>

<llo_original>
// kernel: tpu_custom_call.1
$region0: #{tpu_custom_call.1}
  #allocation0 [shape = 'u32[]', space=smem, size = 0x4, offset = 0x4, fixed_abs, tag = 'smem constant byte address 0x4 - core index']
  #allocation1 [shape = 'u32[144,128]{1,0:T(1,128)}', space=vmem, size = 0x12000, scoped, tag = 'internal scratch']
  %s0 = inlined_call_operand.vmem [shape: f32[6,128], index: 0, kind: input, shape index: {}]
  %s1 = inlined_call_operand.vmem [shape: bf16[32,6], index: 1, kind: input, shape index: {}]
  %s2 = inlined_call_operand.vmem [shape: f32[32,1], index: 2, kind: input, shape index: {}]
  %s3 = inlined_call_operand.vmem [shape: bf16[32,32], index: 3, kind: input, shape index: {}]
  %s4 = inlined_call_operand.vmem [shape: f32[32,1], index: 4, kind: input, shape index: {}]
  %s5 = inlined_call_operand.vmem [shape: bf16[2,32], index: 5, kind: input, shape index: {}]
  %s6 = inlined_call_operand.vmem [shape: f32[2,1], index: 6, kind: input, shape index: {}]
  %s7 = inlined_call_operand.hbm [shape: f32[2,128], index: 7, kind: output, shape index: {}]
  %s8 = sld [smem:[#allocation0]]
  $region38: #{tpu_custom_call.1} parent=0
    _
  %s10 = ssub.s32 1, %s8
  %s11 = scalar_select 0, %s10, %s8
  $region1: #{tpu_custom_call.1} parent=0
    #allocation2 [shape = 'u8[1024]{0}', space=vmem, size = 0x400, scoped, tag = 'output window, operand 0, single buffered']
    #allocation3 [shape = 's32[1]{0}', space=sflag, size = 0x4, scoped, tag = 'scoped memory for tpu_custom_call.1']
    %12 = vsyncpa [#allocation3], 0
    // Predicated region
    $region2: #{tpu_custom_call.1} parent=1 // pred_check
      _
    $region3: #{tpu_custom_call.1} parent=1 // pred_check_branch
      %14 = sbr.rel (0) target = $region5
    $region4: #{tpu_custom_call.1} parent=1 // pred_region
      _
    $region5: #{tpu_custom_call.1} parent=1 // pred_fallthru
      _
    // Predicated region
    $region6: #{tpu_custom_call.1} parent=1 // pred_check
      _
    $region7: #{tpu_custom_call.1} parent=1 // pred_check_branch
      %16 = sbr.rel (0) target = $region9
    $region8: #{tpu_custom_call.1} parent=1 // pred_region
      _
    $region9: #{tpu_custom_call.1} parent=1 // pred_fallthru
      _
    // Predicated region
    $region10: #{tpu_custom_call.1} parent=1 // pred_check
      _
    $region11: #{tpu_custom_call.1} parent=1 // pred_check_branch
      %18 = sbr.rel (0) target = $region13
    $region12: #{tpu_custom_call.1} parent=1 // pred_region
      _
    $region13: #{tpu_custom_call.1} parent=1 // pred_fallthru
      _
    // Predicated region
    $region14: #{tpu_custom_call.1} parent=1 // pred_check
      _
    $region15: #{tpu_custom_call.1} parent=1 // pred_check_branch
      %20 = sbr.rel (0) target = $region17
    $region16: #{tpu_custom_call.1} parent=1 // pred_region
      _
    $region17: #{tpu_custom_call.1} parent=1 // pred_fallthru
      _
    // Predicated region
    $region18: #{tpu_custom_call.1} parent=1 // pred_check
      _
    $region19: #{tpu_custom_call.1} parent=1 // pred_check_branch
      %22 = sbr.rel (0) target = $region21
    $region20: #{tpu_custom_call.1} parent=1 // pred_region
      _
    $region21: #{tpu_custom_call.1} parent=1 // pred_fallthru
      _
    // Predicated region
    $region22: #{tpu_custom_call.1} parent=1 // pred_check
      _
    $region23: #{tpu_custom_call.1} parent=1 // pred_check_branch
      %24 = sbr.rel (0) target = $region25
    $region24: #{tpu_custom_call.1} parent=1 // pred_region
      _
    $region25: #{tpu_custom_call.1} parent=1 // pred_fallthru
      _
    // Predicated region
    $region26: #{tpu_custom_call.1} parent=1 // pred_check
      _
    $region27: #{tpu_custom_call.1} parent=1 // pred_check_branch
      %26 = sbr.rel (0) target = $region29
    $region28: #{tpu_custom_call.1} parent=1 // pred_region
      _
    $region29: #{tpu_custom_call.1} parent=1 // pred_fallthru
      _
    %v28 = vld [vmem:[%s0] sm:$0x3f]
    %v29 = vpack.c.bf16 %v28, %v28
    %v30 = vld [vmem:[%s1] sm:$0xf]
    %v31 = vld [vmem:[%s1 + $0x4] sm:$0xf]
    %v32 = vld [vmem:[%s1 + $0x8] sm:$0xf]
    %v33 = vld [vmem:[%s1 + $0xc] sm:$0xf]
    %v34 = vld [vmem:[%s2] sm:$0xff]
    %v35 = vld [vmem:[%s2 + $0x8] sm:$0xff]
    %v36 = vld [vmem:[%s2 + $0x10] sm:$0xff]
    %v37 = vld [vmem:[%s2 + $0x18] sm:$0xff]
    %39 = vset.pattern.permute.xlu0 0
    %40 = vperm.xlu0 %39, %v34
    %v41 = vpop.permute.xlu0 %40
    %44 = vset.pattern.permute.xlu0 0
    %45 = vperm.xlu0 %44, %v35
    %v46 = vpop.permute.xlu0 %45
    %49 = vset.pattern.permute.xlu0 0
    %50 = vperm.xlu0 %49, %v36
    %v51 = vpop.permute.xlu0 %50
    %54 = vset.pattern.permute.xlu0 0
    %55 = vperm.xlu0 %54, %v37
    %v56 = vpop.permute.xlu0 %55
    %v62 = vunpack.c.l.b16 %v30
    %v63 = vunpack.c.l.b16 %v31
    %v64 = vunpack.c.l.b16 %v32
    %v65 = vunpack.c.l.b16 %v33
    %v66 = vpack.c.b16 %v63, %v62
    %v67 = vpack.c.b16 %v65, %v64
    %vm68 = vcmask 48128
    %v70 = vsel %vm68, %v66, 0
    %v73 = vsel %vm68, %v67, 0
    %vm75 = vcmask 1042432
    %v77 = vsel %vm75, %v29, 0
    %79 = vmatprep.subr.bf16.mxu0 0
    %80 = vmatpush1.bf16.msra.mxu0 %v77
    %81 = vmatprep.subr.bf16.mxu0 0
    %82 = vmatpush1.bf16.msra.mxu0 0
    %83 = vmatprep.subr.bf16.mxu0 0
    %84 = vmatpush1.bf16.msra.mxu0 0
    %85 = vmatprep.subr.bf16.mxu0 0
    %86 = vmatpush1.bf16.msra.mxu0 0
    %87 = vmatprep.subr.bf16.mxu0 0
    %88 = vmatpush1.bf16.msra.mxu0 0
    %89 = vmatprep.subr.bf16.mxu0 0
    %90 = vmatpush1.bf16.msra.mxu0 0
    %91 = vmatprep.subr.bf16.mxu0 0
    %92 = vmatpush1.bf16.msra.mxu0 0
    %93 = vmatprep.subr.bf16.mxu0 0
    %94 = vmatpush1.bf16.msra.mxu0 0
    %95 = vmatprep.subr.bf16.mxu0 0
    %96 = vmatpush1.bf16.msra.mxu0 0
    %97 = vmatprep.subr.bf16.mxu0 0
    %98 = vmatpush1.bf16.msra.mxu0 0
    %99 = vmatprep.subr.bf16.mxu0 0
    %100 = vmatpush1.bf16.msra.mxu0 0
    %101 = vmatprep.subr.bf16.mxu0 0
    %102 = vmatpush1.bf16.msra.mxu0 0
    %103 = vmatprep.subr.bf16.mxu0 0
    %104 = vmatpush1.bf16.msra.mxu0 0
    %105 = vmatprep.subr.bf16.mxu0 0
    %106 = vmatpush1.bf16.msra.mxu0 0
    %107 = vmatprep.subr.bf16.mxu0 0
    %108 = vmatpush1.bf16.msra.mxu0 0
    %109 = vmatprep.subr.bf16.mxu0 0
    %110 = vmatpush1.bf16.msra.mxu0 0
    %111 = vmatprep.mubr.bf16.mxu0 0
    %112 = vmatmul.mubr.bf16.gmra.mrb[0].mxu0 %v70
    %v113 = vpop.f32.mrb[0].mxu0
    %v114 = vadd.f32 %v41, %v113
    %v115 = vpop.f32.mrb[0].mxu0
    %v116 = vpop.f32.mrb[0].mxu0
    %v117 = vadd.f32 %v46, %v116
    %v118 = vpop.f32.mrb[0].mxu0
    %119 = vmatprep.mubr.bf16.mxu0 0
    %120 = vmatmul.mubr.bf16.gmra.mrb[0].mxu0 %v73
    %v121 = vpop.f32.mrb[0].mxu0
    %v122 = vadd.f32 %v51, %v121
    %v123 = vpop.f32.mrb[0].mxu0
    %v124 = vpop.f32.mrb[0].mxu0
    %v125 = vadd.f32 %v56, %v124
    %v126 = vpop.f32.mrb[0].mxu0
    %127 = vdwg.mxu0
    %v128 = vmax.f32 %v114, 0.0
    %v129 = vmax.f32 %v117, 0.0
    %v130 = vmax.f32 %v122, 0.0
    %v131 = vmax.f32 %v125, 0.0
    %v132 = vld [vmem:[%s3] sm:$0xf]
    %v133 = vld [vmem:[%s3 + $0x4] sm:$0xf]
    %v134 = vld [vmem:[%s3 + $0x8] sm:$0xf]
    %v135 = vld [vmem:[%s3 + $0xc] sm:$0xf]
    %v136 = vpack.c.bf16 %v129, %v128
    %v137 = vpack.c.bf16 %v131, %v130
    %v138 = vld [vmem:[%s4] sm:$0xff]
    %v139 = vld [vmem:[%s4 + $0x8] sm:$0xff]
    %v140 = vld [vmem:[%s4 + $0x10] sm:$0xff]
    %v141 = vld [vmem:[%s4 + $0x18] sm:$0xff]
    %143 = vset.pattern.permute.xlu0 0
    %144 = vperm.xlu0 %143, %v138
    %v145 = vpop.permute.xlu0 %144
    %148 = vset.pattern.permute.xlu0 0
    %149 = vperm.xlu0 %148, %v139
    %v150 = vpop.permute.xlu0 %149
    %153 = vset.pattern.permute.xlu0 0
    %154 = vperm.xlu0 %153, %v140
    %v155 = vpop.permute.xlu0 %154
    %158 = vset.pattern.permute.xlu0 0
    %159 = vperm.xlu0 %158, %v141
    %v160 = vpop.permute.xlu0 %159
    %v166 = vunpack.c.l.b16 %v132
    %v167 = vunpack.c.l.b16 %v133
    %v168 = vunpack.c.l.b16 %v134
    %v169 = vunpack.c.l.b16 %v135
    %v170 = vpack.c.b16 %v167, %v166
    %v171 = vpack.c.b16 %v169, %v168
    %vm172 = vcmask 261120
    %v174 = vsel %vm172, %v170, 0
    %v177 = vsel %vm172, %v171, 0
    %179 = vmatprep.subr.bf16.mxu0 0
    %180 = vmatpush1.bf16.msra.mxu0 %v136
    %181 = vmatprep.subr.bf16.mxu0 0
    %182 = vmatpush1.bf16.msra.mxu0 %v137
    %183 = vmatprep.subr.bf16.mxu0 0
    %184 = vmatpush1.bf16.msra.mxu0 0
    %185 = vmatprep.subr.bf16.mxu0 0
    %186 = vmatpush1.bf16.msra.mxu0 0
    %187 = vmatprep.subr.bf16.mxu0 0
    %188 = vmatpush1.bf16.msra.mxu0 0
    %189 = vmatprep.subr.bf16.mxu0 0
    %190 = vmatpush1.bf16.msra.mxu0 0
    %191 = vmatprep.subr.bf16.mxu0 0
    %192 = vmatpush1.bf16.msra.mxu0 0
    %193 = vmatprep.subr.bf16.mxu0 0
    %194 = vmatpush1.bf16.msra.mxu0 0
    %195 = vmatprep.subr.bf16.mxu0 0
    %196 = vmatpush1.bf16.msra.mxu0 0
    %197 = vmatprep.subr.bf16.mxu0 0
    %198 = vmatpush1.bf16.msra.mxu0 0
    %199 = vmatprep.subr.bf16.mxu0 0
    %200 = vmatpush1.bf16.msra.mxu0 0
    %201 = vmatprep.subr.bf16.mxu0 0
    %202 = vmatpush1.bf16.msra.mxu0 0
    %203 = vmatprep.subr.bf16.mxu0 0
    %204 = vmatpush1.bf16.msra.mxu0 0
    %205 = vmatprep.subr.bf16.mxu0 0
    %206 = vmatpush1.bf16.msra.mxu0 0
    %207 = vmatprep.subr.bf16.mxu0 0
    %208 = vmatpush1.bf16.msra.mxu0 0
    %209 = vmatprep.subr.bf16.mxu0 0
    %210 = vmatpush1.bf16.msra.mxu0 0
    %211 = vmatprep.mubr.bf16.mxu0 0
    %212 = vmatmul.mubr.bf16.gmra.mrb[0].mxu0 %v174
    %v213 = vpop.f32.mrb[0].mxu0
    %v214 = vadd.f32 %v145, %v213
    %v215 = vpop.f32.mrb[0].mxu0
    %v216 = vpop.f32.mrb[0].mxu0
    %v217 = vadd.f32 %v150, %v216
    %v218 = vpop.f32.mrb[0].mxu0
    %219 = vmatprep.mubr.bf16.mxu0 0
    %220 = vmatmul.mubr.bf16.gmra.mrb[0].mxu0 %v177
    %v221 = vpop.f32.mrb[0].mxu0
    %v222 = vadd.f32 %v155, %v221
    %v223 = vpop.f32.mrb[0].mxu0
    %v224 = vpop.f32.mrb[0].mxu0
    %v225 = vadd.f32 %v160, %v224
    %v226 = vpop.f32.mrb[0].mxu0
    %227 = vdwg.mxu0
    %v228 = vmax.f32 %v214, 0.0
    %v229 = vmax.f32 %v217, 0.0
    %v230 = vmax.f32 %v222, 0.0
    %v231 = vmax.f32 %v225, 0.0
    %v232 = vld [vmem:[%s5] sm:$0x1]
    %v233 = vpack.c.bf16 %v229, %v228
    %v234 = vpack.c.bf16 %v231, %v230
    %v235 = vld [vmem:[%s6] sm:$0x3]
    %237 = vset.pattern.permute.xlu0 0
    %238 = vperm.xlu0 %237, %v235
    %v239 = vpop.permute.xlu0 %238
    %v242 = vsel %vm172, %v232, 0
    %244 = vmatprep.subr.bf16.mxu0 0
    %245 = vmatpush1.bf16.msra.mxu0 %v233
    %246 = vmatprep.subr.bf16.mxu0 0
    %247 = vmatpush1.bf16.msra.mxu0 %v234
    %248 = vmatprep.subr.bf16.mxu0 0
    %249 = vmatpush1.bf16.msra.mxu0 0
    %250 = vmatprep.subr.bf16.mxu0 0
    %251 = vmatpush1.bf16.msra.mxu0 0
    %252 = vmatprep.subr.bf16.mxu0 0
    %253 = vmatpush1.bf16.msra.mxu0 0
    %254 = vmatprep.subr.bf16.mxu0 0
    %255 = vmatpush1.bf16.msra.mxu0 0
    %256 = vmatprep.subr.bf16.mxu0 0
    %257 = vmatpush1.bf16.msra.mxu0 0
    %258 = vmatprep.subr.bf16.mxu0 0
    %259 = vmatpush1.bf16.msra.mxu0 0
    %260 = vmatprep.subr.bf16.mxu0 0
    %261 = vmatpush1.bf16.msra.mxu0 0
    %262 = vmatprep.subr.bf16.mxu0 0
    %263 = vmatpush1.bf16.msra.mxu0 0
    %264 = vmatprep.subr.bf16.mxu0 0
    %265 = vmatpush1.bf16.msra.mxu0 0
    %266 = vmatprep.subr.bf16.mxu0 0
    %267 = vmatpush1.bf16.msra.mxu0 0
    %268 = vmatprep.subr.bf16.mxu0 0
    %269 = vmatpush1.bf16.msra.mxu0 0
    %270 = vmatprep.subr.bf16.mxu0 0
    %271 = vmatpush1.bf16.msra.mxu0 0
    %272 = vmatprep.subr.bf16.mxu0 0
    %273 = vmatpush1.bf16.msra.mxu0 0
    %274 = vmatprep.subr.bf16.mxu0 0
    %275 = vmatpush1.bf16.msra.mxu0 0
    %276 = vmatprep.mubr.bf16.mxu0 0
    %277 = vmatmul.mubr.bf16.gmra.mrb[0].mxu0 %v242
    %v278 = vpop.f32.mrb[0].mxu0
    %v279 = vadd.f32 %v239, %v278
    %v280 = vpop.f32.mrb[0].mxu0
    %v281 = vpop.f32.mrb[0].mxu0
    %v282 = vpop.f32.mrb[0].mxu0
    %283 = vdwg.mxu0
    %v284 = vtanh.pop %v279
    %v285 = vmul.f32 %v284, 0.78
    %286 = vst [vmem:[#allocation2] sm:$0x3] %v285
    // Predicated region
    $region30: #{tpu_custom_call.1} parent=1 // pred_check
      _
    $region31: #{tpu_custom_call.1} parent=1 // pred_check_branch
      %288 = sbr.rel (0) target = $region33
    $region32: #{tpu_custom_call.1} parent=1 // pred_region
      %s290 = ssub.s32 32, 32
      %291 = vsyncadd [#allocation3], %s290
      %s293 = sshll.u32 [#allocation2], 4
      %s294 = int_to_ptr.vmem [resolvable:$true] %s293
      %296 = dma.vmem_to_hbm [thread:$0]  %s294, 32, %s7, [#allocation3]
    $region33: #{tpu_custom_call.1} parent=1 // pred_fallthru
      _
    // Predicated region
    $region34: #{tpu_custom_call.1} parent=1 // pred_check
      _
    $region35: #{tpu_custom_call.1} parent=1 // pred_check_branch
      %298 = sbr.rel (0) target = $region37
    $region36: #{tpu_custom_call.1} parent=1 // pred_region
      %299 = dma.done [#allocation3], 32
    $region37: #{tpu_custom_call.1} parent=1 // pred_fallthru
      _
    %300 = vsyncpa [#allocation3], 1

</llo_original>
